<compile_context>
chip_gen: v6e
topology: v6e:2x2x1
jax: 0.10.0
libtpu: 0.0.40
codegen_flags: <defaults>
</compile_context>

<pallas_src>
import functools
import math

import jax
import jax.numpy as jnp
from jax.experimental import pallas as pl
from jax.experimental.pallas import tpu as pltpu

_THRESHOLD = 0.9
_BN_EPS = 1e-5
_HALF_LOG_2PI = 0.5 * math.log(2.0 * math.pi)


def _embedding_kernel(
    embed_dim,
    batch,
    x_ref,      # [Bp, Fp]  bf16 (B zero-padded to mult of 16, F to mult of 128)
    w_ref,      # [Fp, 2E]  bf16  folded weight:  wb @ [wmu | wsig]
    b_ref,      # [1, 2E]   f32   folded bias:    bb @ [wmu | wsig] + [bmu | bsig]
    gamma_ref,  # [1, E]    f32   bn4 weight
    beta_ref,   # [1, E]    f32   bn4 bias
    eps_ref,    # [B, E]    f32   standard-normal noise for rsample
    out_ref,    # [B, E]    f32
    dist_ref,   # [1]       f32   (SMEM scalar)
):
    E = embed_dim
    B = batch

    # Single fused/folded projection: one MXU pass for the whole linear path.
    ms_full = jnp.dot(x_ref[...], w_ref[...], preferred_element_type=jnp.float32)
    ms = ms_full[:B, :] + b_ref[...]          # drop padded batch rows (tile-aligned)
    mu = ms[:, :E]
    s_lin = ms[:, E:]

    # softplus (numerically stable) + 1e-8
    sig = jnp.maximum(s_lin, 0.0) + jnp.log1p(jnp.exp(-jnp.abs(s_lin))) + 1e-8

    # Normal(mu, sig).entropy() = 0.5 + 0.5*log(2*pi) + log(sig)
    entropy = 0.5 + _HALF_LOG_2PI + jnp.log(sig)
    dist_ref[0] = jnp.mean(jnp.maximum(_THRESHOLD - entropy, 0.0))

    # rsample
    z = mu + sig * eps_ref[...]

    # BatchNorm1d (training mode: biased batch statistics) + SiLU (swish4)
    mean = jnp.mean(z, axis=0, keepdims=True)
    var = jnp.mean((z - mean) ** 2, axis=0, keepdims=True)
    z_bn = (z - mean) * jax.lax.rsqrt(var + _BN_EPS) * gamma_ref[...] + beta_ref[...]
    out_ref[...] = z_bn * jax.nn.sigmoid(z_bn)


def prepare_params(params):
    """One-time weight preprocessing (hoisted out of the per-call forward):
    fold bottleneck into the fused mu|sig projection, pad the contraction dim
    to a multiple of 128, and cast the MXU operand to bf16 (fold done in f32)."""
    F = params["wb"].shape[0]
    E = params["wb"].shape[1]
    assert E % 128 == 0, "embed_dim must be a multiple of 128 (lane alignment)"

    wms = jnp.concatenate([params["wmu"], params["wsig"]], axis=1)      # [E, 2E]
    bms = jnp.concatenate([params["bmu"], params["bsig"]], axis=1)      # [1, 2E]

    w_fold = params["wb"].astype(jnp.float32) @ wms                      # [F, 2E] f32
    b_fold = params["bb"].astype(jnp.float32) @ wms + bms                # [1, 2E] f32

    Fp = ((F + 127) // 128) * 128
    w_fold = jnp.pad(w_fold, ((0, Fp - F), (0, 0))).astype(jnp.bfloat16)  # [Fp, 2E]

    return {
        "w": w_fold,
        "b": b_fold,
        "gamma": params["gamma"],
        "beta": params["beta"],
    }


@jax.jit
def embedding_forward(x, prepared, eps):
    """x: [B, F] f32; eps: [B, E] f32 standard normal. Returns (out [B, E], dist scalar)."""
    B, F = x.shape
    Fp = prepared["w"].shape[0]
    E = prepared["w"].shape[1] // 2

    # Pad batch to a full (16,128) bf16 sublane tile and the contraction dim
    # to the pre-padded weight depth; padding rows/cols are zero and are
    # sliced away / contribute 0 inside the kernel.
    Bp = ((B + 15) // 16) * 16
    x_p = jnp.pad(x, ((0, Bp - B), (0, Fp - F))).astype(jnp.bfloat16)

    out, dist = pl.pallas_call(
        functools.partial(_embedding_kernel, E, B),
        out_shape=(
            jax.ShapeDtypeStruct((B, E), jnp.float32),
            jax.ShapeDtypeStruct((1,), jnp.float32),
        ),
        in_specs=[
            pl.BlockSpec(memory_space=pltpu.MemorySpace.VMEM),   # x_p
            pl.BlockSpec(memory_space=pltpu.MemorySpace.VMEM),   # w_fold
            pl.BlockSpec(memory_space=pltpu.MemorySpace.VMEM),   # b_fold
            pl.BlockSpec(memory_space=pltpu.MemorySpace.VMEM),   # gamma
            pl.BlockSpec(memory_space=pltpu.MemorySpace.VMEM),   # beta
            pl.BlockSpec(memory_space=pltpu.MemorySpace.VMEM),   # eps
        ],
        out_specs=(
            pl.BlockSpec(memory_space=pltpu.MemorySpace.VMEM),
            pl.BlockSpec(memory_space=pltpu.MemorySpace.SMEM),
        ),
    )(
        x_p,
        prepared["w"],
        prepared["b"],
        prepared["gamma"],
        prepared["beta"],
        eps,
    )
    return out, dist[0]


def init_params(key, feature_dim, embed_dim):
    """Deterministic synthetic init (xavier_normal for Linear weights, zero biases,
    gamma=1 / beta=0 for BatchNorm — matching the PyTorch module's init scheme)."""
    k_b, k_mu, k_sig = jax.random.split(key, 3)

    def xavier_normal(k, fan_in, fan_out):
        std = math.sqrt(2.0 / (fan_in + fan_out))
        # stored transposed: [in, out]
        return jax.random.normal(k, (fan_in, fan_out), jnp.float32) * std

    return {
        "wb": xavier_normal(k_b, feature_dim, embed_dim),
        "bb": jnp.zeros((1, embed_dim), jnp.float32),
        "wmu": xavier_normal(k_mu, embed_dim, embed_dim),
        "bmu": jnp.zeros((1, embed_dim), jnp.float32),
        "wsig": xavier_normal(k_sig, embed_dim, embed_dim),
        "bsig": jnp.zeros((1, embed_dim), jnp.float32),
        "gamma": jnp.ones((1, embed_dim), jnp.float32),
        "beta": jnp.zeros((1, embed_dim), jnp.float32),
    }


if __name__ == "__main__":
    B, FEATURE_DIM, EMBED_DIM = 8, 64, 128

    key = jax.random.PRNGKey(0)
    k_x, k_p, k_eps = jax.random.split(key, 3)

    x = jax.random.normal(k_x, (B, FEATURE_DIM), jnp.float32)
    params = init_params(k_p, FEATURE_DIM, EMBED_DIM)
    prepared = prepare_params(params)   # one-time weight fold/pad/cast (off the per-call path)

    # TODO(synk): rsample noise is drawn on the host (jax.random) rather than
    # with the in-kernel PRNG so runs are reproducible across tilings.
    eps = jax.random.normal(k_eps, (B, EMBED_DIM), jnp.float32)

    out, dist = embedding_forward(x, prepared, eps)
    jax.block_until_ready((out, dist))

    assert out.shape == (B, EMBED_DIM) and out.dtype == jnp.float32
    assert dist.shape == () and dist.dtype == jnp.float32
    assert bool(jnp.all(jnp.isfinite(out))) and bool(jnp.isfinite(dist))
    print("KERNEL_OK")
</pallas_src>

<mosaic_0001>
module attributes {stable_mosaic.version = 11 : i64} {
  func.func @_embedding_kernel(%arg0: memref<16x128xbf16, #tpu.memory_space<vmem>>, %arg1: memref<128x256xbf16, #tpu.memory_space<vmem>>, %arg2: memref<1x256xf32, #tpu.memory_space<vmem>>, %arg3: memref<1x128xf32, #tpu.memory_space<vmem>>, %arg4: memref<1x128xf32, #tpu.memory_space<vmem>>, %arg5: memref<8x128xf32, #tpu.memory_space<vmem>>, %arg6: memref<8x128xf32, #tpu.memory_space<vmem>>, %arg7: memref<1xf32, #tpu.memory_space<smem>>) attributes {dimension_semantics = [], scalar_prefetch = 0 : i64, scratch_operands = 0 : i64, tpu.core_type = #tpu.core_type<tc>} {
    %c0 = arith.constant 0 : index
    %c0_0 = arith.constant 0 : index
    %0 = vector.load %arg0[%c0, %c0_0] : memref<16x128xbf16, #tpu.memory_space<vmem>>, vector<16x128xbf16>
    %c0_1 = arith.constant 0 : index
    %c0_2 = arith.constant 0 : index
    %1 = vector.load %arg1[%c0_1, %c0_2] : memref<128x256xbf16, #tpu.memory_space<vmem>>, vector<128x256xbf16>
    %cst = arith.constant dense<0.000000e+00> : vector<16x256xf32>
    %2 = tpu.matmul %0, %1, %cst {dimension_numbers = #tpu.dot_dimension_numbers<[1], [0], [0], [1], [0, 0, 1, 1], [], []>} : vector<16x128xbf16>, vector<128x256xbf16>, vector<16x256xf32> -> vector<16x256xf32>
    %3 = vector.extract_strided_slice %2 {offsets = [0, 0], sizes = [8, 256], strides = [1, 1]} : vector<16x256xf32> to vector<8x256xf32>
    %c0_3 = arith.constant 0 : index
    %c0_4 = arith.constant 0 : index
    %4 = vector.load %arg2[%c0_3, %c0_4] : memref<1x256xf32, #tpu.memory_space<vmem>>, vector<1x256xf32>
    %5 = vector.broadcast %4 : vector<1x256xf32> to vector<8x256xf32>
    %6 = arith.addf %3, %5 : vector<8x256xf32>
    %7 = vector.extract_strided_slice %6 {offsets = [0, 0], sizes = [8, 128], strides = [1, 1]} : vector<8x256xf32> to vector<8x128xf32>
    %8 = vector.extract_strided_slice %6 {offsets = [0, 128], sizes = [8, 128], strides = [1, 1]} : vector<8x256xf32> to vector<8x128xf32>
    %cst_5 = arith.constant 0.000000e+00 : f32
    %9 = vector.broadcast %cst_5 : f32 to vector<8x128xf32>
    %10 = arith.maximumf %8, %9 : vector<8x128xf32>
    %11 = math.absf %8 : vector<8x128xf32>
    %cst_6 = arith.constant 0.000000e+00 : f32
    %12 = vector.broadcast %cst_6 : f32 to vector<8x128xf32>
    %13 = arith.subf %12, %11 : vector<8x128xf32>
    %14 = math.exp %13 : vector<8x128xf32>
    %15 = math.log1p %14 : vector<8x128xf32>
    %16 = arith.addf %10, %15 : vector<8x128xf32>
    %cst_7 = arith.constant 9.99999993E-9 : f32
    %17 = vector.broadcast %cst_7 : f32 to vector<8x128xf32>
    %18 = arith.addf %16, %17 : vector<8x128xf32>
    %19 = math.log %18 : vector<8x128xf32>
    %cst_8 = arith.constant 1.41893852 : f32
    %20 = vector.broadcast %cst_8 : f32 to vector<8x128xf32>
    %21 = arith.addf %20, %19 : vector<8x128xf32>
    %cst_9 = arith.constant 0.899999976 : f32
    %22 = vector.broadcast %cst_9 : f32 to vector<8x128xf32>
    %23 = arith.subf %22, %21 : vector<8x128xf32>
    %cst_10 = arith.constant 0.000000e+00 : f32
    %24 = vector.broadcast %cst_10 : f32 to vector<8x128xf32>
    %25 = arith.maximumf %23, %24 : vector<8x128xf32>
    %26 = vector.shape_cast %25 : vector<8x128xf32> to vector<1x8x128xf32>
    %cst_11 = arith.constant dense<0.000000e+00> : vector<1xf32>
    %27 = vector.multi_reduction <add>, %26, %cst_11 [1, 2] : vector<1x8x128xf32> to vector<1xf32>
    %28 = vector.shape_cast %27 : vector<1xf32> to vector<1x1x1xf32>
    %29 = vector.extract %28[0, 0, 0] : f32 from vector<1x1x1xf32>
    %cst_12 = arith.constant 1.024000e+03 : f32
    %30 = arith.divf %29, %cst_12 : f32
    %c0_13 = arith.constant 0 : index
    %31 = memref.load %arg7[%c0_13] : memref<1xf32, #tpu.memory_space<smem>>
    memref.store %30, %arg7[%c0_13] : memref<1xf32, #tpu.memory_space<smem>>
    %c0_14 = arith.constant 0 : index
    %c0_15 = arith.constant 0 : index
    %32 = vector.load %arg5[%c0_14, %c0_15] : memref<8x128xf32, #tpu.memory_space<vmem>>, vector<8x128xf32>
    %33 = arith.mulf %18, %32 : vector<8x128xf32>
    %34 = arith.addf %7, %33 : vector<8x128xf32>
    %cst_16 = arith.constant dense<0.000000e+00> : vector<128xf32>
    %35 = vector.multi_reduction <add>, %34, %cst_16 [0] : vector<8x128xf32> to vector<128xf32>
    %36 = vector.shape_cast %35 : vector<128xf32> to vector<1x128xf32>
    %cst_17 = arith.constant 8.000000e+00 : f32
    %37 = vector.broadcast %cst_17 : f32 to vector<1x128xf32>
    %38 = arith.divf %36, %37 : vector<1x128xf32>
    %39 = vector.broadcast %38 : vector<1x128xf32> to vector<8x128xf32>
    %40 = arith.subf %34, %39 : vector<8x128xf32>
    %41 = arith.mulf %40, %40 : vector<8x128xf32>
    %cst_18 = arith.constant dense<0.000000e+00> : vector<128xf32>
    %42 = vector.multi_reduction <add>, %41, %cst_18 [0] : vector<8x128xf32> to vector<128xf32>
    %43 = vector.shape_cast %42 : vector<128xf32> to vector<1x128xf32>
    %cst_19 = arith.constant 8.000000e+00 : f32
    %44 = vector.broadcast %cst_19 : f32 to vector<1x128xf32>
    %45 = arith.divf %43, %44 : vector<1x128xf32>
    %46 = vector.broadcast %38 : vector<1x128xf32> to vector<8x128xf32>
    %47 = arith.subf %34, %46 : vector<8x128xf32>
    %cst_20 = arith.constant 9.99999974E-6 : f32
    %48 = vector.broadcast %cst_20 : f32 to vector<1x128xf32>
    %49 = arith.addf %45, %48 : vector<1x128xf32>
    %50 = math.rsqrt %49 : vector<1x128xf32>
    %51 = vector.broadcast %50 : vector<1x128xf32> to vector<8x128xf32>
    %52 = arith.mulf %47, %51 : vector<8x128xf32>
    %c0_21 = arith.constant 0 : index
    %c0_22 = arith.constant 0 : index
    %53 = vector.load %arg3[%c0_21, %c0_22] : memref<1x128xf32, #tpu.memory_space<vmem>>, vector<1x128xf32>
    %54 = vector.broadcast %53 : vector<1x128xf32> to vector<8x128xf32>
    %55 = arith.mulf %52, %54 : vector<8x128xf32>
    %c0_23 = arith.constant 0 : index
    %c0_24 = arith.constant 0 : index
    %56 = vector.load %arg4[%c0_23, %c0_24] : memref<1x128xf32, #tpu.memory_space<vmem>>, vector<1x128xf32>
    %57 = vector.broadcast %56 : vector<1x128xf32> to vector<8x128xf32>
    %58 = arith.addf %55, %57 : vector<8x128xf32>
    %59 = arith.negf %58 : vector<8x128xf32>
    %60 = math.exp %59 : vector<8x128xf32>
    %cst_25 = arith.constant 1.000000e+00 : f32
    %61 = vector.broadcast %cst_25 : f32 to vector<8x128xf32>
    %62 = arith.addf %61, %60 : vector<8x128xf32>
    %63 = arith.divf %61, %62 : vector<8x128xf32>
    %64 = arith.mulf %58, %63 : vector<8x128xf32>
    %c0_26 = arith.constant 0 : index
    %c0_27 = arith.constant 0 : index
    %65 = vector.load %arg6[%c0_26, %c0_27] : memref<8x128xf32, #tpu.memory_space<vmem>>, vector<8x128xf32>
    tpu.vector_store %arg6[%c0_26, %c0_27], %64 {strides = array<i32>} : memref<8x128xf32, #tpu.memory_space<vmem>>, vector<8x128xf32>,
    return
  }
}

</mosaic_0001>

<llo_original>
// kernel: embedding_forward.1
$region0: #{embedding_forward.1}
  #allocation0 [shape = 'u32[]', space=smem, size = 0x4, offset = 0x4, fixed_abs, tag = 'smem constant byte address 0x4 - core index']
  #allocation1 [shape = 'u32[144,128]{1,0:T(1,128)}', space=vmem, size = 0x12000, scoped, tag = 'internal scratch']
  %s0 = inlined_call_operand.vmem [shape: bf16[16,128], index: 0, kind: input, shape index: {}]
  %s1 = inlined_call_operand.hbm [shape: bf16[128,256], index: 1, kind: input, shape index: {}]
  %s2 = inlined_call_operand.vmem [shape: f32[1,256], index: 2, kind: input, shape index: {}]
  %s3 = inlined_call_operand.vmem [shape: f32[1,128], index: 3, kind: input, shape index: {}]
  %s4 = inlined_call_operand.vmem [shape: f32[1,128], index: 4, kind: input, shape index: {}]
  %s5 = inlined_call_operand.vmem [shape: f32[8,128], index: 5, kind: input, shape index: {}]
  %s6 = inlined_call_operand.hbm [shape: f32[8,128], index: 6, kind: output, shape index: {0}]
  %s7 = inlined_call_operand.hbm [shape: f32[1], index: 7, kind: output, shape index: {1}]
  %8 = xla_tuple %s6, %s7
  %s9 = sld [smem:[#allocation0]]
  $region46: #{embedding_forward.1} parent=0
    _
  %s11 = ssub.s32 1, %s9
  %s12 = scalar_select 0, %s11, %s9
  $region1: #{embedding_forward.1} parent=0
    #allocation2 [shape = 'u8[65536]{0}', space=vmem, size = 0x10000, scoped, tag = 'input window, operand 1, single buffered']
    #allocation3 [shape = 's32[1]{0}', space=sflag, size = 0x4, scoped, tag = 'scoped memory for embedding_forward.1']
    #allocation4 [shape = 's32[1]{0}', space=sflag, size = 0x4, scoped, tag = 'scoped memory for embedding_forward.1']
    #allocation5 [shape = 's32[1]{0}', space=sflag, size = 0x4, scoped, tag = 'scoped memory for embedding_forward.1']
    #allocation6 [shape = 'u8[4096]{0}', space=vmem, size = 0x1000, scoped, tag = 'output window, operand 0, single buffered']
    #allocation7 [shape = 'u8[512]{0}', space=smem, size = 0x200, scoped, tag = 'output window, operand 1, single buffered']
    %13 = vsyncpa [#allocation3], 0
    %14 = vsyncpa [#allocation4], 0
    %15 = vsyncpa [#allocation5], 0
    // Predicated region
    $region2: #{embedding_forward.1} parent=1 // pred_check
      _
    $region3: #{embedding_forward.1} parent=1 // pred_check_branch
      %17 = sbr.rel (0) target = $region5
    $region4: #{embedding_forward.1} parent=1 // pred_region
      _
    $region5: #{embedding_forward.1} parent=1 // pred_fallthru
      _
    // Predicated region
    $region6: #{embedding_forward.1} parent=1 // pred_check
      _
    $region7: #{embedding_forward.1} parent=1 // pred_check_branch
      %19 = sbr.rel (0) target = $region9
    $region8: #{embedding_forward.1} parent=1 // pred_region
      %s21 = ssub.s32 2048, 2048
      %22 = vsyncadd [#allocation3], %s21
      %s23 = sshll.u32 [#allocation2], 4
      %s24 = int_to_ptr.vmem [resolvable:$true] %s23
      %29 = dma.hbm_to_vmem [thread:$0]  %s1, 2048, %s24, [#allocation3], 128, 128, 8
    $region9: #{embedding_forward.1} parent=1 // pred_fallthru
      _
    // Predicated region
    $region10: #{embedding_forward.1} parent=1 // pred_check
      _
    $region11: #{embedding_forward.1} parent=1 // pred_check_branch
      %31 = sbr.rel (0) target = $region13
    $region12: #{embedding_forward.1} parent=1 // pred_region
      _
    $region13: #{embedding_forward.1} parent=1 // pred_fallthru
      _
    // Predicated region
    $region14: #{embedding_forward.1} parent=1 // pred_check
      _
    $region15: #{embedding_forward.1} parent=1 // pred_check_branch
      %33 = sbr.rel (0) target = $region17
    $region16: #{embedding_forward.1} parent=1 // pred_region
      _
    $region17: #{embedding_forward.1} parent=1 // pred_fallthru
      _
    // Predicated region
    $region18: #{embedding_forward.1} parent=1 // pred_check
      _
    $region19: #{embedding_forward.1} parent=1 // pred_check_branch
      %35 = sbr.rel (0) target = $region21
    $region20: #{embedding_forward.1} parent=1 // pred_region
      _
    $region21: #{embedding_forward.1} parent=1 // pred_fallthru
      _
    // Predicated region
    $region22: #{embedding_forward.1} parent=1 // pred_check
      _
    $region23: #{embedding_forward.1} parent=1 // pred_check_branch
      %37 = sbr.rel (0) target = $region25
    $region24: #{embedding_forward.1} parent=1 // pred_region
      _
    $region25: #{embedding_forward.1} parent=1 // pred_fallthru
      _
    // Predicated region
    $region26: #{embedding_forward.1} parent=1 // pred_check
      _
    $region27: #{embedding_forward.1} parent=1 // pred_check_branch
      %39 = sbr.rel (0) target = $region29
    $region28: #{embedding_forward.1} parent=1 // pred_region
      %40 = dma.done [#allocation3], 2048
    $region29: #{embedding_forward.1} parent=1 // pred_fallthru
      _
    %v42 = vld [vmem:[%s0] sm:$0xf]
    %v43 = vld [vmem:[%s0 + $0x4] sm:$0xf]
    %v44 = vld [vmem:[#allocation2] sm:$0xff]
    %v45 = vld [vmem:[#allocation2 + $0x8] sm:$0xff]
    %v46 = vld [vmem:[#allocation2 + $0x10] sm:$0xff]
    %v47 = vld [vmem:[#allocation2 + $0x18] sm:$0xff]
    %v48 = vld [vmem:[#allocation2 + $0x20] sm:$0xff]
    %v49 = vld [vmem:[#allocation2 + $0x28] sm:$0xff]
    %v50 = vld [vmem:[#allocation2 + $0x30] sm:$0xff]
    %v51 = vld [vmem:[#allocation2 + $0x38] sm:$0xff]
    %v52 = vld [vmem:[#allocation2 + $0x40] sm:$0xff]
    %v53 = vld [vmem:[#allocation2 + $0x48] sm:$0xff]
    %v54 = vld [vmem:[#allocation2 + $0x50] sm:$0xff]
    %v55 = vld [vmem:[#allocation2 + $0x58] sm:$0xff]
    %v56 = vld [vmem:[#allocation2 + $0x60] sm:$0xff]
    %v57 = vld [vmem:[#allocation2 + $0x68] sm:$0xff]
    %v58 = vld [vmem:[#allocation2 + $0x70] sm:$0xff]
    %v59 = vld [vmem:[#allocation2 + $0x78] sm:$0xff]
    %v62 = vunpack.c.l.b16 %v42
    %v63 = vunpack.c.l.b16 %v43
    %v64 = vpack.c.b16 %v63, %v62
    %v82 = vunpack.c.l.b16 %v44
    %v83 = vunpack.c.h.b16 %v44
    %v84 = vunpack.c.l.b16 %v45
    %v85 = vunpack.c.h.b16 %v45
    %v86 = vunpack.c.l.b16 %v46
    %v87 = vunpack.c.h.b16 %v46
    %v88 = vunpack.c.l.b16 %v47
    %v89 = vunpack.c.h.b16 %v47
    %v90 = vunpack.c.l.b16 %v48
    %v91 = vunpack.c.h.b16 %v48
    %v92 = vunpack.c.l.b16 %v49
    %v93 = vunpack.c.h.b16 %v49
    %v94 = vunpack.c.l.b16 %v50
    %v95 = vunpack.c.h.b16 %v50
    %v96 = vunpack.c.l.b16 %v51
    %v97 = vunpack.c.h.b16 %v51
    %v98 = vunpack.c.l.b16 %v52
    %v99 = vunpack.c.h.b16 %v52
    %v100 = vunpack.c.l.b16 %v53
    %v101 = vunpack.c.h.b16 %v53
    %v102 = vunpack.c.l.b16 %v54
    %v103 = vunpack.c.h.b16 %v54
    %v104 = vunpack.c.l.b16 %v55
    %v105 = vunpack.c.h.b16 %v55
    %v106 = vunpack.c.l.b16 %v56
    %v107 = vunpack.c.h.b16 %v56
    %v108 = vunpack.c.l.b16 %v57
    %v109 = vunpack.c.h.b16 %v57
    %v110 = vunpack.c.l.b16 %v58
    %v111 = vunpack.c.h.b16 %v58
    %v112 = vunpack.c.l.b16 %v59
    %v113 = vunpack.c.h.b16 %v59
    %v114 = vpack.c.b16 %v84, %v82
    %v115 = vpack.c.b16 %v85, %v83
    %v116 = vpack.c.b16 %v88, %v86
    %v117 = vpack.c.b16 %v89, %v87
    %v118 = vpack.c.b16 %v92, %v90
    %v119 = vpack.c.b16 %v93, %v91
    %v120 = vpack.c.b16 %v96, %v94
    %v121 = vpack.c.b16 %v97, %v95
    %v122 = vpack.c.b16 %v100, %v98
    %v123 = vpack.c.b16 %v101, %v99
    %v124 = vpack.c.b16 %v104, %v102
    %v125 = vpack.c.b16 %v105, %v103
    %v126 = vpack.c.b16 %v108, %v106
    %v127 = vpack.c.b16 %v109, %v107
    %v128 = vpack.c.b16 %v112, %v110
    %v129 = vpack.c.b16 %v113, %v111
    %146 = vmatprep.subr.bf16.mxu0 %v129
    %147 = vmatpush1.bf16.msra.mxu0 %v128
    %148 = vmatprep.subr.bf16.mxu0 %v127
    %149 = vmatpush1.bf16.msra.mxu0 %v126
    %150 = vmatprep.subr.bf16.mxu0 %v125
    %151 = vmatpush1.bf16.msra.mxu0 %v124
    %152 = vmatprep.subr.bf16.mxu0 %v123
    %153 = vmatpush1.bf16.msra.mxu0 %v122
    %154 = vmatprep.subr.bf16.mxu0 %v121
    %155 = vmatpush1.bf16.msra.mxu0 %v120
    %156 = vmatprep.subr.bf16.mxu0 %v119
    %157 = vmatpush1.bf16.msra.mxu0 %v118
    %158 = vmatprep.subr.bf16.mxu0 %v117
    %159 = vmatpush1.bf16.msra.mxu0 %v116
    %160 = vmatprep.subr.bf16.mxu0 %v115
    %161 = vmatpush1.bf16.msra.mxu0 %v114
    %162 = vmatprep.subr.bf16.mxu0 0
    %163 = vmatpush2.bf16.msra.mxu0 0
    %164 = vmatprep.subr.bf16.mxu0 0
    %165 = vmatpush2.bf16.msra.mxu0 0
    %166 = vmatprep.subr.bf16.mxu0 0
    %167 = vmatpush2.bf16.msra.mxu0 0
    %168 = vmatprep.subr.bf16.mxu0 0
    %169 = vmatpush2.bf16.msra.mxu0 0
    %170 = vmatprep.subr.bf16.mxu0 0
    %171 = vmatpush2.bf16.msra.mxu0 0
    %172 = vmatprep.subr.bf16.mxu0 0
    %173 = vmatpush2.bf16.msra.mxu0 0
    %174 = vmatprep.subr.bf16.mxu0 0
    %175 = vmatpush2.bf16.msra.mxu0 0
    %176 = vmatprep.subr.bf16.mxu0 0
    %177 = vmatpush2.bf16.msra.mxu0 0
    %178 = vmatprep.mubr.bf16.mxu0 0
    %179 = vmatmul.mubr.bf16.gmra.mxu0 %v64
    %v180 = vpop.f32.mrf.mxu0
    %v181 = vadd.f32 0.0, %v180
    %v182 = vpop.f32.mrf.mxu0
    %v183 = vadd.f32 0.0, %v182
    %v184 = vpop.f32.mrf.mxu0
    %v185 = vpop.f32.mrf.mxu0
    %186 = vdwg.mxu0
    %v187 = vld [vmem:[%s2] sm:$0x3]
    %v189 = vlaneseq
    %v190 = vshrl.u32 %v189, 7
    %v191 = vsub.s32 0, %v190
    %v192 = vrot.slane %v187, %v191
    %v193 = vlaneseq
    %v194 = vshrl.u32 %v193, 7
    %v195 = vsub.s32 1, %v194
    %v196 = vrot.slane %v187, %v195
    %v199 = vadd.f32 %v181, %v192
    %v200 = vadd.f32 %v183, %v196
    %v201 = vmax.f32 %v200, 0.0
    %v202 = vand.u32 2147483647, %v200
    %v203 = vsub.f32 0.0, %v202
    %v204 = vmul.f32 %v203, 1.442695
    %v205 = vpow.pop %v204
    %v206 = vadd.f32 %v205, 1.0
    %v207 = vlog2.pop %v206
    %v208 = vmul.f32 %v207, 0.6931472
    %v209 = vmul.f32 -0.5, %v205
    %v210 = vadd.f32 %v209, 1.0
    %v211 = vmul.f32 %v210, %v205
    %v212 = vand.u32 2147483647, %v205
    %vm213 = vcmp.lt.f32.partialorder %v212, 0.0004427343
    %v214 = vsel %vm213, %v211, %v208
    %v215 = vadd.f32 %v201, %v214
    %v216 = vadd.f32 %v215, 1e-08
    %v217 = vlog2.pop %v216
    %v218 = vmul.f32 %v217, 0.6931472
    %v219 = vadd.f32 %v218, 1.4189385
    %v220 = vsub.f32 0.9, %v219
    %v221 = vmax.f32 %v220, 0.0
    %222 = vadd.xlane.f32.xlu0 %v221
    %v223 = vpop.xlane.xlu0 %222
    %v224 = vrot.slane %v223, 4
    %v225 = vadd.f32 %v223, %v224
    %v226 = vrot.slane %v225, 2
    %v227 = vadd.f32 %v225, %v226
    %v228 = vrot.slane %v227, 1
    %v229 = vadd.f32 %v227, %v228
    %s230 = vtos %v229
    %v231 = vrcp.pop 1024.0
    %s232 = vtos %v231
    %s233 = smul.f32 %s230, %s232
    %s234 = scalar_lea.smem [#allocation7], 0
    %235 = sst [smem:[%s234]] %s233
    %v236 = vld [vmem:[%s5] sm:$0xff]
    %v237 = vmul.f32 %v216, %v236
    %v238 = vadd.f32 %v199, %v237
    %v239 = vrot.slane %v238, 4
    %v240 = vadd.f32 %v238, %v239
    %v241 = vrot.slane %v240, 2
    %v242 = vadd.f32 %v240, %v241
    %v243 = vrot.slane %v242, 1
    %v244 = vadd.f32 %v242, %v243
    %v245 = vrcp.pop 8.0
    %v246 = vmul.f32 %v244, %v245
    %v247 = vsub.f32 %v238, %v246
    %v248 = vmul.f32 %v247, %v247
    %v249 = vrot.slane %v248, 4
    %v250 = vadd.f32 %v248, %v249
    %v251 = vrot.slane %v250, 2
    %v252 = vadd.f32 %v250, %v251
    %v253 = vrot.slane %v252, 1
    %v254 = vadd.f32 %v252, %v253
    %v255 = vmul.f32 %v254, %v245
    %v256 = vadd.f32 %v255, 1e-05
    %v257 = vrsqrt.pop %v256
    %v258 = vmul.f32 %v247, %v257
    %v259 = vld [vmem:[%s3] sm:$0x1]
    %v261 = vlaneseq
    %v262 = vshrl.u32 %v261, 7
    %v263 = vsub.s32 0, %v262
    %v264 = vrot.slane %v259, %v263
    %v266 = vmul.f32 %v258, %v264
    %v267 = vld [vmem:[%s4] sm:$0x1]
    %v269 = vlaneseq
    %v270 = vshrl.u32 %v269, 7
    %v271 = vsub.s32 0, %v270
    %v272 = vrot.slane %v267, %v271
    %v274 = vadd.f32 %v266, %v272
    %v275 = vxor.u32 %v274, 2147483648
    %v276 = vmul.f32 %v275, 1.442695
    %v277 = vpow.pop %v276
    %v278 = vadd.f32 %v277, 1.0
    %v279 = vrcp.pop %v278
    %v280 = vmul.f32 1.0, %v279
    %v281 = vmul.f32 %v274, %v280
    %282 = vst [vmem:[#allocation6] sm:$0xff] %v281
    // Predicated region
    $region30: #{embedding_forward.1} parent=1 // pred_check
      _
    $region31: #{embedding_forward.1} parent=1 // pred_check_branch
      %284 = sbr.rel (0) target = $region33
    $region32: #{embedding_forward.1} parent=1 // pred_region
      %s286 = ssub.s32 128, 128
      %287 = vsyncadd [#allocation4], %s286
      %s289 = sshll.u32 [#allocation6], 4
      %s290 = int_to_ptr.vmem [resolvable:$true] %s289
      %292 = dma.vmem_to_hbm [thread:$0]  %s290, 128, %s6, [#allocation4]
    $region33: #{embedding_forward.1} parent=1 // pred_fallthru
      _
    // Predicated region
    $region34: #{embedding_forward.1} parent=1 // pred_check
      _
    $region35: #{embedding_forward.1} parent=1 // pred_check_branch
      %294 = sbr.rel (0) target = $region37
    $region36: #{embedding_forward.1} parent=1 // pred_region
      %s296 = ssub.s32 16, 16
      %297 = vsyncadd [#allocation5], %s296
      %300 = dma.smem_to_hbm [#allocation7], 16, %s7, [#allocation5]
    $region37: #{embedding_forward.1} parent=1 // pred_fallthru
      _
    // Predicated region
    $region38: #{embedding_forward.1} parent=1 // pred_check
      _
    $region39: #{embedding_forward.1} parent=1 // pred_check_branch
      %302 = sbr.rel (0) target = $region41
    $region40: #{embedding_forward.1} parent=1 // pred_region
      %303 = dma.done [#allocation4], 128
    $region41: #{embedding_forward.1} parent=1 // pred_fallthru
      _
    // Predicated region
    $region42: #{embedding_forward.1} parent=1 // pred_check
      _
    $region43: #{embedding_forward.1} parent=1 // pred_check_branch
      %305 = sbr.rel (0) target = $region45
    $region44: #{embedding_forward.1} parent=1 // pred_region
      %306 = dma.done [#allocation5], 16
    $region45: #{embedding_forward.1} parent=1 // pred_fallthru
      _
    %307 = sfence
    %308 = vsyncpa [#allocation3], 1
    %309 = vsyncpa [#allocation4], 1
    %310 = vsyncpa [#allocation5], 1

</llo_original>
